<compile_context>
chip_gen: v7x
topology: tpu7x:2x2x1
jax: 0.10.0
libtpu: 0.0.40
codegen_flags: <defaults>
</compile_context>

<pallas_src>
import jax
import jax.numpy as jnp
import numpy as np
from jax.experimental import pallas as pl
from jax.experimental.pallas import tpu as pltpu


# ----------------------------------------------------------------------------- kernel
def _encoder_kernel(x_ref, m_ref, w1, b1, w2, b2, w3, b3, w4, b4, w5, b5,
                    o_ref, gmax_ref):
    """Fused point MLP + running max over point chunks + FC head epilogue.

    x_ref:    (TB, TN, D)  f32 raw points (unmasked)
    m_ref:    (TB, TN, 1)  f32 mask
    o_ref:    (TB, out_dim) f32 final output (written on the last N-step)
    gmax_ref: (TB, 256)    f32 VMEM running max (persists across the N axis)
    """
    nk = pl.program_id(1)
    tb, tn, d = x_ref.shape

    # Flatten (collapse leading dims only -> trivial relayout) so the MXU sees
    # TB*TN rows at once.
    x = x_ref[...].astype(jnp.bfloat16).reshape(tb * tn, d)
    m = m_ref[...].reshape(tb * tn, 1)

    # Layer 1 (conv1 + folded bn1, zero-padded to 128 channels).  Mask applied as a
    # row-scale on the matmul output: (x @ w1) * m + b1 == ((x*m) @ w1) + b1.
    h = jnp.dot(x, w1[...], preferred_element_type=jnp.float32) * m + b1[...]
    h = jnp.maximum(h, 0.0)                                              # (TB*TN, 128)

    # Layer 2 (conv2 + folded bn2) + relu.
    h = jnp.dot(h.astype(jnp.bfloat16), w2[...],
                preferred_element_type=jnp.float32) + b2[...]
    h = jnp.maximum(h, 0.0)                                              # (TB*TN, 128)

    # Layer 3 (conv3 + folded bn3), no relu (matches the PyTorch module).
    h = jnp.dot(h.astype(jnp.bfloat16), w3[...],
                preferred_element_type=jnp.float32) + b3[...]            # (TB*TN, 256)

    # Max over this point chunk, accumulated into the running max across N-steps.
    blk_max = jnp.max(h.reshape(tb, tn, h.shape[-1]), axis=1)            # (TB, 256)

    @pl.when(nk == 0)
    def _init():
        gmax_ref[...] = jnp.full(gmax_ref.shape, -jnp.inf, dtype=gmax_ref.dtype)

    gmax_ref[...] = jnp.maximum(gmax_ref[...], blk_max)

    # FC head epilogue (linear1 + folded bn4 + relu, then linear2), last N-step only.
    @pl.when(nk == pl.num_programs(1) - 1)
    def _head():
        g = jnp.dot(gmax_ref[...].astype(jnp.bfloat16), w4[...],
                    preferred_element_type=jnp.float32) + b4[...]
        g = jnp.maximum(g, 0.0)                                          # (TB, 256)
        o_ref[...] = jnp.dot(g.astype(jnp.bfloat16), w5[...],
                             preferred_element_type=jnp.float32) + b5[...]


# ----------------------------------------------------------------------------- tiling
def _legal_divisors(full):
    """Divisors d of `full` that are layout-legal as a sublane block dim."""
    return [d for d in range(1, full + 1) if full % d == 0 and (d % 8 == 0 or d == full)]


def _pick_tiles(B, N, max_rows=4096):
    """Pick (TB, TN) with TB*TN <= max_rows (both layout-legal).

    max_rows=4096 keeps the per-step f32 intermediates well under v7x's 64 MiB/TC
    VMEM while amortizing the ~0.35 us per-grid-step overhead on v5e/v6e as well.
    """
    tn_opts = _legal_divisors(N)
    tn = max([t for t in tn_opts if t <= max_rows], default=min(tn_opts))
    tb_opts = _legal_divisors(B)
    tb = max([t for t in tb_opts if t * tn <= max_rows], default=min(tb_opts))
    return tb, tn


# ----------------------------------------------------------------------------- wrapper
def point_cloud_encoder(x, mask, fused, *, block_b=None, block_n=None, max_rows=4096):
    """x: (B, N, D) f32, mask: (B, N) -> (B, output_dim) f32.

    `fused` holds BN-folded weights w1..w5 (bf16, (in,out), layer 1/2 padded to 128)
    and biases b1..b5 (f32, (1,out)).
    """
    B, N, D = x.shape
    out_dim = fused["w5"].shape[1]
    c1 = fused["w1"].shape[1]

    TB, TN = _pick_tiles(B, N, max_rows)
    if block_b is not None:
        TB = block_b
    if block_n is not None:
        TN = block_n
    assert B % TB == 0 and N % TN == 0

    mask3 = mask.astype(jnp.float32).reshape(B, N, 1)   # free metadata reshape

    weights = [fused[k] for k in ("w1", "b1", "w2", "b2", "w3", "b3",
                                  "w4", "b4", "w5", "b5")]
    w_specs = [pl.BlockSpec(p.shape, lambda b, n: (0, 0)) for p in weights]

    flops = (2 * B * N * (D * c1 + c1 * 128 + 128 * 256)
             + 2 * B * (256 * 256 + 256 * out_dim))
    bytes_accessed = (x.size * 4 + mask3.size * 4
                      + sum(int(np.prod(p.shape)) * p.dtype.itemsize for p in weights)
                      + B * out_dim * 4)

    out = pl.pallas_call(
        _encoder_kernel,
        out_shape=jax.ShapeDtypeStruct((B, out_dim), jnp.float32),
        grid=(B // TB, N // TN),
        in_specs=[pl.BlockSpec((TB, TN, D), lambda b, n: (b, n, 0)),
                  pl.BlockSpec((TB, TN, 1), lambda b, n: (b, n, 0))] + w_specs,
        out_specs=pl.BlockSpec((TB, out_dim), lambda b, n: (b, 0)),
        scratch_shapes=[pltpu.VMEM((TB, 256), jnp.float32)],
        compiler_params=pltpu.CompilerParams(
            dimension_semantics=("parallel", "arbitrary"),
            vmem_limit_bytes=48 * 1024 * 1024),
        cost_estimate=pl.CostEstimate(flops=flops, transcendentals=0,
                                      bytes_accessed=bytes_accessed),
    )(x.astype(jnp.float32), mask3, *weights)
    return out


# ----------------------------------------------------------------------------- params
def init_raw_params(key, input_dim=8, output_dim=256):
    """Synthetic parameters matching the PyTorch module's shapes.

    Conv1d(k=1) / Linear weights are stored pre-transposed as (in, out).
    BatchNorm layers get non-trivial (eval-mode) running stats / affine params.
    """
    dims = [(input_dim, 64), (64, 128), (128, 256), (256, 256), (256, output_dim)]
    bn_dims = [64, 128, 256, 256]
    keys = iter(jax.random.split(key, 2 * len(dims) + 4 * len(bn_dims)))
    p = {}
    for i, (din, dout) in enumerate(dims, start=1):
        bound = 1.0 / np.sqrt(din)
        p[f"w{i}"] = jax.random.uniform(next(keys), (din, dout), jnp.float32, -bound, bound)
        p[f"b{i}"] = jax.random.uniform(next(keys), (dout,), jnp.float32, -bound, bound)
    for i, c in enumerate(bn_dims, start=1):
        p[f"bn{i}_gamma"] = jax.random.uniform(next(keys), (c,), jnp.float32, 0.8, 1.2)
        p[f"bn{i}_beta"] = jax.random.uniform(next(keys), (c,), jnp.float32, -0.1, 0.1)
        p[f"bn{i}_mean"] = 0.1 * jax.random.normal(next(keys), (c,), jnp.float32)
        p[f"bn{i}_var"] = jax.random.uniform(next(keys), (c,), jnp.float32, 0.5, 1.5)
    return p


def fold_params(raw, eps=1e-5, pad_c1=128):
    """Fold eval-mode BN into weights, zero-pad layer 1 to `pad_c1` output channels
    (and layer 2's matching input rows), cast weights to bf16, keep biases f32."""
    tmp = {}
    for i in range(1, 6):
        w = raw[f"w{i}"]
        b = raw[f"b{i}"]
        if i <= 4:  # bn1..bn4 follow layers 1..4
            scale = raw[f"bn{i}_gamma"] / jnp.sqrt(raw[f"bn{i}_var"] + eps)
            w = w * scale[None, :]
            b = (b - raw[f"bn{i}_mean"]) * scale + raw[f"bn{i}_beta"]
        tmp[f"w{i}"], tmp[f"b{i}"] = w, b

    c1 = tmp["w1"].shape[1]
    if pad_c1 and c1 < pad_c1:
        pad = pad_c1 - c1
        # Padded channels: (x@0)*m + 0 -> relu(0) = 0, and w2's zero rows kill them.
        tmp["w1"] = jnp.pad(tmp["w1"], ((0, 0), (0, pad)))
        tmp["b1"] = jnp.pad(tmp["b1"], ((0, pad),))
        tmp["w2"] = jnp.pad(tmp["w2"], ((0, pad), (0, 0)))

    fused = {}
    for i in range(1, 6):
        fused[f"w{i}"] = tmp[f"w{i}"].astype(jnp.bfloat16)
        fused[f"b{i}"] = tmp[f"b{i}"].reshape(1, -1).astype(jnp.float32)
    return fused


# ----------------------------------------------------------------------------- pure-JAX reference
def reference(x, mask, raw, eps=1e-5):
    def bn(h, i):
        scale = raw[f"bn{i}_gamma"] / jnp.sqrt(raw[f"bn{i}_var"] + eps)
        return (h - raw[f"bn{i}_mean"]) * scale + raw[f"bn{i}_beta"]

    xm = x * mask[..., None]
    h = jax.nn.relu(bn(xm @ raw["w1"] + raw["b1"], 1))
    h = jax.nn.relu(bn(h @ raw["w2"] + raw["b2"], 2))
    h = bn(h @ raw["w3"] + raw["b3"], 3)
    g = jnp.max(h, axis=1)                                              # (B, 256)
    g = jax.nn.relu(bn(g @ raw["w4"] + raw["b4"], 4))
    return g @ raw["w5"] + raw["b5"]


# ----------------------------------------------------------------------------- main
if __name__ == "__main__":
    key = jax.random.PRNGKey(0)
    k_x, k_m, k_p = jax.random.split(key, 3)

    B, N, D, OUT = 2, 16, 8, 256
    x = jax.random.normal(k_x, (B, N, D), jnp.float32)
    mask = (jax.random.uniform(k_m, (B, N)) > 0.3).astype(jnp.float32)

    raw = init_raw_params(k_p, input_dim=D, output_dim=OUT)
    fused = fold_params(raw)

    out = point_cloud_encoder(x, mask, fused)
    out = jax.block_until_ready(out)

    ref = reference(x, mask, raw)
    assert out.shape == (B, OUT), out.shape
    # bf16 matmuls (f32 accumulation) vs. f32 reference -> loose tolerance.
    np.testing.assert_allclose(np.asarray(out), np.asarray(ref), rtol=5e-2, atol=5e-2)

    print("KERNEL_OK")
</pallas_src>

<mosaic_0001>
module attributes {stable_mosaic.version = 11 : i64} {
  func.func @_encoder_kernel(%arg0: i32, %arg1: i32, %arg2: memref<2x16x8xf32, #tpu.memory_space<vmem>>, %arg3: memref<2x16x1xf32, #tpu.memory_space<vmem>>, %arg4: memref<8x128xbf16, #tpu.memory_space<vmem>>, %arg5: memref<1x128xf32, #tpu.memory_space<vmem>>, %arg6: memref<128x128xbf16, #tpu.memory_space<vmem>>, %arg7: memref<1x128xf32, #tpu.memory_space<vmem>>, %arg8: memref<128x256xbf16, #tpu.memory_space<vmem>>, %arg9: memref<1x256xf32, #tpu.memory_space<vmem>>, %arg10: memref<256x256xbf16, #tpu.memory_space<vmem>>, %arg11: memref<1x256xf32, #tpu.memory_space<vmem>>, %arg12: memref<256x256xbf16, #tpu.memory_space<vmem>>, %arg13: memref<1x256xf32, #tpu.memory_space<vmem>>, %arg14: memref<2x256xf32, #tpu.memory_space<vmem>>, %arg15: memref<2x256xf32, #tpu.memory_space<vmem>>) attributes {dimension_semantics = [#tpu.dimension_semantics<parallel>, #tpu.dimension_semantics<arbitrary>], iteration_bounds = array<i64: 1, 1>, scalar_prefetch = 0 : i64, scratch_operands = 1 : i64, tpu.core_type = #tpu.core_type<tc>, window_params = [{transform_indices = @transform_0, window_bounds = array<i64: 2, 16, 8>}, {transform_indices = @transform_1, window_bounds = array<i64: 2, 16, 1>}, {pipeline_mode = #tpu.pipeline_mode<synchronous>, transform_indices = @transform_2, window_bounds = array<i64: 8, 128>}, {pipeline_mode = #tpu.pipeline_mode<synchronous>, transform_indices = @transform_3, window_bounds = array<i64: 1, 128>}, {pipeline_mode = #tpu.pipeline_mode<synchronous>, transform_indices = @transform_4, window_bounds = array<i64: 128, 128>}, {pipeline_mode = #tpu.pipeline_mode<synchronous>, transform_indices = @transform_5, window_bounds = array<i64: 1, 128>}, {pipeline_mode = #tpu.pipeline_mode<synchronous>, transform_indices = @transform_6, window_bounds = array<i64: 128, 256>}, {pipeline_mode = #tpu.pipeline_mode<synchronous>, transform_indices = @transform_7, window_bounds = array<i64: 1, 256>}, {pipeline_mode = #tpu.pipeline_mode<synchronous>, transform_indices = @transform_8, window_bounds = array<i64: 256, 256>}, {pipeline_mode = #tpu.pipeline_mode<synchronous>, transform_indices = @transform_9, window_bounds = array<i64: 1, 256>}, {pipeline_mode = #tpu.pipeline_mode<synchronous>, transform_indices = @transform_10, window_bounds = array<i64: 256, 256>}, {pipeline_mode = #tpu.pipeline_mode<synchronous>, transform_indices = @transform_11, window_bounds = array<i64: 1, 256>}, {transform_indices = @transform_12, window_bounds = array<i64: 2, 256>}]} {
    %c0 = arith.constant 0 : index
    %c0_0 = arith.constant 0 : index
    %c0_1 = arith.constant 0 : index
    %0 = vector.load %arg2[%c0, %c0_0, %c0_1] : memref<2x16x8xf32, #tpu.memory_space<vmem>>, vector<2x16x8xf32>
    %1 = arith.truncf %0 : vector<2x16x8xf32> to vector<2x16x8xbf16>
    %2 = vector.shape_cast %1 : vector<2x16x8xbf16> to vector<32x8xbf16>
    %c0_2 = arith.constant 0 : index
    %c0_3 = arith.constant 0 : index
    %c0_4 = arith.constant 0 : index
    %3 = vector.load %arg3[%c0_2, %c0_3, %c0_4] : memref<2x16x1xf32, #tpu.memory_space<vmem>>, vector<2x16x1xf32>
    %4 = vector.shape_cast %3 : vector<2x16x1xf32> to vector<32x1xf32>
    %c0_5 = arith.constant 0 : index
    %c0_6 = arith.constant 0 : index
    %5 = vector.load %arg4[%c0_5, %c0_6] : memref<8x128xbf16, #tpu.memory_space<vmem>>, vector<8x128xbf16>
    %cst = arith.constant dense<0.000000e+00> : vector<32x128xf32>
    %6 = tpu.matmul %2, %5, %cst {dimension_numbers = #tpu.dot_dimension_numbers<[1], [0], [0], [1], [0, 0, 1, 1], [], []>} : vector<32x8xbf16>, vector<8x128xbf16>, vector<32x128xf32> -> vector<32x128xf32>
    %7 = vector.broadcast %4 : vector<32x1xf32> to vector<32x128xf32>
    %8 = arith.mulf %6, %7 : vector<32x128xf32>
    %c0_7 = arith.constant 0 : index
    %c0_8 = arith.constant 0 : index
    %9 = vector.load %arg5[%c0_7, %c0_8] : memref<1x128xf32, #tpu.memory_space<vmem>>, vector<1x128xf32>
    %10 = vector.broadcast %9 : vector<1x128xf32> to vector<32x128xf32>
    %11 = arith.addf %8, %10 : vector<32x128xf32>
    %cst_9 = arith.constant 0.000000e+00 : f32
    %12 = vector.broadcast %cst_9 : f32 to vector<32x128xf32>
    %13 = arith.maximumf %11, %12 : vector<32x128xf32>
    %14 = arith.truncf %13 : vector<32x128xf32> to vector<32x128xbf16>
    %c0_10 = arith.constant 0 : index
    %c0_11 = arith.constant 0 : index
    %15 = vector.load %arg6[%c0_10, %c0_11] : memref<128x128xbf16, #tpu.memory_space<vmem>>, vector<128x128xbf16>
    %cst_12 = arith.constant dense<0.000000e+00> : vector<32x128xf32>
    %16 = tpu.matmul %14, %15, %cst_12 {dimension_numbers = #tpu.dot_dimension_numbers<[1], [0], [0], [1], [0, 0, 1, 1], [], []>} : vector<32x128xbf16>, vector<128x128xbf16>, vector<32x128xf32> -> vector<32x128xf32>
    %c0_13 = arith.constant 0 : index
    %c0_14 = arith.constant 0 : index
    %17 = vector.load %arg7[%c0_13, %c0_14] : memref<1x128xf32, #tpu.memory_space<vmem>>, vector<1x128xf32>
    %18 = vector.broadcast %17 : vector<1x128xf32> to vector<32x128xf32>
    %19 = arith.addf %16, %18 : vector<32x128xf32>
    %cst_15 = arith.constant 0.000000e+00 : f32
    %20 = vector.broadcast %cst_15 : f32 to vector<32x128xf32>
    %21 = arith.maximumf %19, %20 : vector<32x128xf32>
    %22 = arith.truncf %21 : vector<32x128xf32> to vector<32x128xbf16>
    %c0_16 = arith.constant 0 : index
    %c0_17 = arith.constant 0 : index
    %23 = vector.load %arg8[%c0_16, %c0_17] : memref<128x256xbf16, #tpu.memory_space<vmem>>, vector<128x256xbf16>
    %cst_18 = arith.constant dense<0.000000e+00> : vector<32x256xf32>
    %24 = tpu.matmul %22, %23, %cst_18 {dimension_numbers = #tpu.dot_dimension_numbers<[1], [0], [0], [1], [0, 0, 1, 1], [], []>} : vector<32x128xbf16>, vector<128x256xbf16>, vector<32x256xf32> -> vector<32x256xf32>
    %c0_19 = arith.constant 0 : index
    %c0_20 = arith.constant 0 : index
    %25 = vector.load %arg9[%c0_19, %c0_20] : memref<1x256xf32, #tpu.memory_space<vmem>>, vector<1x256xf32>
    %26 = vector.broadcast %25 : vector<1x256xf32> to vector<32x256xf32>
    %27 = arith.addf %24, %26 : vector<32x256xf32>
    %28 = vector.shape_cast %27 : vector<32x256xf32> to vector<2x16x256xf32>
    %cst_21 = arith.constant dense<0xFF800000> : vector<2x256xf32>
    %29 = vector.multi_reduction <maximumf>, %28, %cst_21 [1] : vector<2x16x256xf32> to vector<2x256xf32>
    %c0_i32 = arith.constant 0 : i32
    %30 = arith.cmpi eq, %arg1, %c0_i32 : i32
    %31 = arith.extui %30 : i1 to i32
    %c0_i32_22 = arith.constant 0 : i32
    %32 = arith.cmpi ne, %31, %c0_i32_22 : i32
    scf.if %32 {
      %cst_29 = arith.constant 0xFF800000 : f32
      %39 = vector.broadcast %cst_29 : f32 to vector<2x256xf32>
      %c0_30 = arith.constant 0 : index
      %c0_31 = arith.constant 0 : index
      %40 = vector.load %arg15[%c0_30, %c0_31] : memref<2x256xf32, #tpu.memory_space<vmem>>, vector<2x256xf32>
      tpu.vector_store %arg15[%c0_30, %c0_31], %39 {strides = array<i32>} : memref<2x256xf32, #tpu.memory_space<vmem>>, vector<2x256xf32>,
    } else {
    }
    %c0_23 = arith.constant 0 : index
    %c0_24 = arith.constant 0 : index
    %33 = vector.load %arg15[%c0_23, %c0_24] : memref<2x256xf32, #tpu.memory_space<vmem>>, vector<2x256xf32>
    %34 = arith.maximumf %33, %29 : vector<2x256xf32>
    %c0_25 = arith.constant 0 : index
    %c0_26 = arith.constant 0 : index
    %35 = vector.load %arg15[%c0_25, %c0_26] : memref<2x256xf32, #tpu.memory_space<vmem>>, vector<2x256xf32>
    tpu.vector_store %arg15[%c0_25, %c0_26], %34 {strides = array<i32>} : memref<2x256xf32, #tpu.memory_space<vmem>>, vector<2x256xf32>,
    %c0_i32_27 = arith.constant 0 : i32
    %36 = arith.cmpi eq, %arg1, %c0_i32_27 : i32
    %37 = arith.extui %36 : i1 to i32
    %c0_i32_28 = arith.constant 0 : i32
    %38 = arith.cmpi ne, %37, %c0_i32_28 : i32
    scf.if %38 {
      %c0_29 = arith.constant 0 : index
      %c0_30 = arith.constant 0 : index
      %39 = vector.load %arg15[%c0_29, %c0_30] : memref<2x256xf32, #tpu.memory_space<vmem>>, vector<2x256xf32>
      %40 = arith.truncf %39 : vector<2x256xf32> to vector<2x256xbf16>
      %c0_31 = arith.constant 0 : index
      %c0_32 = arith.constant 0 : index
      %41 = vector.load %arg10[%c0_31, %c0_32] : memref<256x256xbf16, #tpu.memory_space<vmem>>, vector<256x256xbf16>
      %cst_33 = arith.constant dense<0.000000e+00> : vector<2x256xf32>
      %42 = tpu.matmul %40, %41, %cst_33 {dimension_numbers = #tpu.dot_dimension_numbers<[1], [0], [0], [1], [0, 0, 1, 1], [], []>} : vector<2x256xbf16>, vector<256x256xbf16>, vector<2x256xf32> -> vector<2x256xf32>
      %c0_34 = arith.constant 0 : index
      %c0_35 = arith.constant 0 : index
      %43 = vector.load %arg11[%c0_34, %c0_35] : memref<1x256xf32, #tpu.memory_space<vmem>>, vector<1x256xf32>
      %44 = vector.broadcast %43 : vector<1x256xf32> to vector<2x256xf32>
      %45 = arith.addf %42, %44 : vector<2x256xf32>
      %cst_36 = arith.constant 0.000000e+00 : f32
      %46 = vector.broadcast %cst_36 : f32 to vector<2x256xf32>
      %47 = arith.maximumf %45, %46 : vector<2x256xf32>
      %48 = arith.truncf %47 : vector<2x256xf32> to vector<2x256xbf16>
      %c0_37 = arith.constant 0 : index
      %c0_38 = arith.constant 0 : index
      %49 = vector.load %arg12[%c0_37, %c0_38] : memref<256x256xbf16, #tpu.memory_space<vmem>>, vector<256x256xbf16>
      %cst_39 = arith.constant dense<0.000000e+00> : vector<2x256xf32>
      %50 = tpu.matmul %48, %49, %cst_39 {dimension_numbers = #tpu.dot_dimension_numbers<[1], [0], [0], [1], [0, 0, 1, 1], [], []>} : vector<2x256xbf16>, vector<256x256xbf16>, vector<2x256xf32> -> vector<2x256xf32>
      %c0_40 = arith.constant 0 : index
      %c0_41 = arith.constant 0 : index
      %51 = vector.load %arg13[%c0_40, %c0_41] : memref<1x256xf32, #tpu.memory_space<vmem>>, vector<1x256xf32>
      %52 = vector.broadcast %51 : vector<1x256xf32> to vector<2x256xf32>
      %53 = arith.addf %50, %52 : vector<2x256xf32>
      %c0_42 = arith.constant 0 : index
      %c0_43 = arith.constant 0 : index
      %54 = vector.load %arg14[%c0_42, %c0_43] : memref<2x256xf32, #tpu.memory_space<vmem>>, vector<2x256xf32>
      tpu.vector_store %arg14[%c0_42, %c0_43], %53 {strides = array<i32>} : memref<2x256xf32, #tpu.memory_space<vmem>>, vector<2x256xf32>,
    } else {
    }
    return
  }
  func.func @transform_0(%arg0: i32, %arg1: i32) -> (i32, i32, i32) {
    %c0_i32 = arith.constant 0 : i32
    %c0_i32_0 = arith.constant 0 : i32
    return %arg0, %arg1, %c0_i32 : i32, i32, i32
  }
  func.func @transform_1(%arg0: i32, %arg1: i32) -> (i32, i32, i32) {
    %c0_i32 = arith.constant 0 : i32
    %c0_i32_0 = arith.constant 0 : i32
    return %arg0, %arg1, %c0_i32 : i32, i32, i32
  }
  func.func @transform_2(%arg0: i32, %arg1: i32) -> (i32, i32) {
    %c0_i32 = arith.constant 0 : i32
    %c0_i32_0 = arith.constant 0 : i32
    %c0_i32_1 = arith.constant 0 : i32
    return %c0_i32, %c0_i32_0 : i32, i32
  }
  func.func @transform_3(%arg0: i32, %arg1: i32) -> (i32, i32) {
    %c0_i32 = arith.constant 0 : i32
    %c0_i32_0 = arith.constant 0 : i32
    %c0_i32_1 = arith.constant 0 : i32
    return %c0_i32, %c0_i32_0 : i32, i32
  }
  func.func @transform_4(%arg0: i32, %arg1: i32) -> (i32, i32) {
    %c0_i32 = arith.constant 0 : i32
    %c0_i32_0 = arith.constant 0 : i32
    %c0_i32_1 = arith.constant 0 : i32
    return %c0_i32, %c0_i32_0 : i32, i32
  }
  func.func @transform_5(%arg0: i32, %arg1: i32) -> (i32, i32) {
    %c0_i32 = arith.constant 0 : i32
    %c0_i32_0 = arith.constant 0 : i32
    %c0_i32_1 = arith.constant 0 : i32
    return %c0_i32, %c0_i32_0 : i32, i32
  }
  func.func @transform_6(%arg0: i32, %arg1: i32) -> (i32, i32) {
    %c0_i32 = arith.constant 0 : i32
    %c0_i32_0 = arith.constant 0 : i32
    %c0_i32_1 = arith.constant 0 : i32
    return %c0_i32, %c0_i32_0 : i32, i32
  }
  func.func @transform_7(%arg0: i32, %arg1: i32) -> (i32, i32) {
    %c0_i32 = arith.constant 0 : i32
    %c0_i32_0 = arith.constant 0 : i32
    %c0_i32_1 = arith.constant 0 : i32
    return %c0_i32, %c0_i32_0 : i32, i32
  }
  func.func @transform_8(%arg0: i32, %arg1: i32) -> (i32, i32) {
    %c0_i32 = arith.constant 0 : i32
    %c0_i32_0 = arith.constant 0 : i32
    %c0_i32_1 = arith.constant 0 : i32
    return %c0_i32, %c0_i32_0 : i32, i32
  }
  func.func @transform_9(%arg0: i32, %arg1: i32) -> (i32, i32) {
    %c0_i32 = arith.constant 0 : i32
    %c0_i32_0 = arith.constant 0 : i32
    %c0_i32_1 = arith.constant 0 : i32
    return %c0_i32, %c0_i32_0 : i32, i32
  }
  func.func @transform_10(%arg0: i32, %arg1: i32) -> (i32, i32) {
    %c0_i32 = arith.constant 0 : i32
    %c0_i32_0 = arith.constant 0 : i32
    %c0_i32_1 = arith.constant 0 : i32
    return %c0_i32, %c0_i32_0 : i32, i32
  }
  func.func @transform_11(%arg0: i32, %arg1: i32) -> (i32, i32) {
    %c0_i32 = arith.constant 0 : i32
    %c0_i32_0 = arith.constant 0 : i32
    %c0_i32_1 = arith.constant 0 : i32
    return %c0_i32, %c0_i32_0 : i32, i32
  }
  func.func @transform_12(%arg0: i32, %arg1: i32) -> (i32, i32) {
    %c0_i32 = arith.constant 0 : i32
    %c0_i32_0 = arith.constant 0 : i32
    return %arg0, %c0_i32 : i32, i32
  }
}

</mosaic_0001>

<llo_original>
// kernel: tpu_custom_call.1
$region0: #{tpu_custom_call.1}
  #allocation0 [shape = 'u32[]', space=smem, size = 0x4, offset = 0x4, fixed_abs, tag = 'smem constant byte address 0x4 - core index']
  #allocation1 [shape = 'u32[144,128]{1,0:T(1,128)}', space=vmem, size = 0x12000, scoped, tag = 'internal scratch']
  #allocation2 [shape = 'f32[2,256]{1,0:T(2,128)}', space=vmem, size = 0x800, scoped, tag = 'scratch operand']
  %s0 = inlined_call_operand.vmem [shape: f32[2,16,8], index: 0, kind: input, shape index: {}]
  %s1 = inlined_call_operand.vmem [shape: f32[2,16,1], index: 1, kind: input, shape index: {}]
  %s2 = inlined_call_operand.vmem [shape: bf16[8,128], index: 2, kind: input, shape index: {}]
  %s3 = inlined_call_operand.vmem [shape: f32[1,128], index: 3, kind: input, shape index: {}]
  %s4 = inlined_call_operand.vmem [shape: bf16[128,128], index: 4, kind: input, shape index: {}]
  %s5 = inlined_call_operand.vmem [shape: f32[1,128], index: 5, kind: input, shape index: {}]
  %s6 = inlined_call_operand.hbm [shape: bf16[128,256], index: 6, kind: input, shape index: {}]
  %s7 = inlined_call_operand.vmem [shape: f32[1,256], index: 7, kind: input, shape index: {}]
  %s8 = inlined_call_operand.hbm [shape: bf16[256,256], index: 8, kind: input, shape index: {}]
  %s9 = inlined_call_operand.vmem [shape: f32[1,256], index: 9, kind: input, shape index: {}]
  %s10 = inlined_call_operand.hbm [shape: bf16[256,256], index: 10, kind: input, shape index: {}]
  %s11 = inlined_call_operand.vmem [shape: f32[1,256], index: 11, kind: input, shape index: {}]
  %s12 = inlined_call_operand.hbm [shape: f32[2,256], index: 12, kind: output, shape index: {}]
  %s13 = sld [smem:[#allocation0]]
  $region78: #{tpu_custom_call.1} parent=0
    _
  %s15 = ssub.s32 1, %s13
  %s16 = scalar_select 0, %s15, %s13
  $region1: #{tpu_custom_call.1} parent=0
    #allocation3 [shape = 'u8[65536]{0}', space=vmem, size = 0x10000, scoped, tag = 'input window, operand 6, single buffered']
    #allocation4 [shape = 's32[1]{0}', space=sflag, size = 0x4, scoped, tag = 'scoped memory for tpu_custom_call.1']
    #allocation5 [shape = 's32[1]{0}', space=sflag, size = 0x4, scoped, tag = 'scoped memory for tpu_custom_call.1']
    #allocation6 [shape = 'u8[131072]{0}', space=vmem, size = 0x20000, scoped, tag = 'input window, operand 8, single buffered']
    #allocation7 [shape = 's32[1]{0}', space=sflag, size = 0x4, scoped, tag = 'scoped memory for tpu_custom_call.1']
    #allocation8 [shape = 'u8[131072]{0}', space=vmem, size = 0x20000, scoped, tag = 'input window, operand 10, single buffered']
    #allocation9 [shape = 'u8[2048]{0}', space=vmem, size = 0x800, scoped, tag = 'output window, operand 0, single buffered']
    %17 = vsyncpa [#allocation4], 0
    %18 = vsyncpa [#allocation7], 0
    %19 = vsyncpa [#allocation5], 0
    // Predicated region
    $region2: #{tpu_custom_call.1} parent=1 // pred_check
      _
    $region3: #{tpu_custom_call.1} parent=1 // pred_check_branch
      %21 = sbr.rel (0) target = $region5
    $region4: #{tpu_custom_call.1} parent=1 // pred_region
      _
    $region5: #{tpu_custom_call.1} parent=1 // pred_fallthru
      _
    // Predicated region
    $region6: #{tpu_custom_call.1} parent=1 // pred_check
      _
    $region7: #{tpu_custom_call.1} parent=1 // pred_check_branch
      %23 = sbr.rel (0) target = $region9
    $region8: #{tpu_custom_call.1} parent=1 // pred_region
      _
    $region9: #{tpu_custom_call.1} parent=1 // pred_fallthru
      _
    // Predicated region
    $region10: #{tpu_custom_call.1} parent=1 // pred_check
      _
    $region11: #{tpu_custom_call.1} parent=1 // pred_check_branch
      %25 = sbr.rel (0) target = $region13
    $region12: #{tpu_custom_call.1} parent=1 // pred_region
      _
    $region13: #{tpu_custom_call.1} parent=1 // pred_fallthru
      _
    // Predicated region
    $region14: #{tpu_custom_call.1} parent=1 // pred_check
      _
    $region15: #{tpu_custom_call.1} parent=1 // pred_check_branch
      %27 = sbr.rel (0) target = $region17
    $region16: #{tpu_custom_call.1} parent=1 // pred_region
      _
    $region17: #{tpu_custom_call.1} parent=1 // pred_fallthru
      _
    // Predicated region
    $region18: #{tpu_custom_call.1} parent=1 // pred_check
      _
    $region19: #{tpu_custom_call.1} parent=1 // pred_check_branch
      %29 = sbr.rel (0) target = $region21
    $region20: #{tpu_custom_call.1} parent=1 // pred_region
      _
    $region21: #{tpu_custom_call.1} parent=1 // pred_fallthru
      _
    // Predicated region
    $region22: #{tpu_custom_call.1} parent=1 // pred_check
      _
    $region23: #{tpu_custom_call.1} parent=1 // pred_check_branch
      %31 = sbr.rel (0) target = $region25
    $region24: #{tpu_custom_call.1} parent=1 // pred_region
      _
    $region25: #{tpu_custom_call.1} parent=1 // pred_fallthru
      _
    // Predicated region
    $region26: #{tpu_custom_call.1} parent=1 // pred_check
      _
    $region27: #{tpu_custom_call.1} parent=1 // pred_check_branch
      %33 = sbr.rel (0) target = $region29
    $region28: #{tpu_custom_call.1} parent=1 // pred_region
      %s35 = ssub.s32 2048, 2048
      %36 = vsyncadd [#allocation4], %s35
      %s37 = sshll.u32 [#allocation3], 4
      %s38 = int_to_ptr.vmem [resolvable:$true] %s37
      %43 = dma.hbm_to_vmem [thread:$0]  %s6, 2048, %s38, [#allocation4], 128, 128, 8
    $region29: #{tpu_custom_call.1} parent=1 // pred_fallthru
      _
    // Predicated region
    $region30: #{tpu_custom_call.1} parent=1 // pred_check
      _
    $region31: #{tpu_custom_call.1} parent=1 // pred_check_branch
      %45 = sbr.rel (0) target = $region33
    $region32: #{tpu_custom_call.1} parent=1 // pred_region
      _
    $region33: #{tpu_custom_call.1} parent=1 // pred_fallthru
      _
    // Predicated region
    $region34: #{tpu_custom_call.1} parent=1 // pred_check
      _
    $region35: #{tpu_custom_call.1} parent=1 // pred_check_branch
      %47 = sbr.rel (0) target = $region37
    $region36: #{tpu_custom_call.1} parent=1 // pred_region
      %s49 = ssub.s32 4096, 4096
      %50 = vsyncadd [#allocation7], %s49
      %s51 = sshll.u32 [#allocation6], 4
      %s52 = int_to_ptr.vmem [resolvable:$true] %s51
      %57 = dma.hbm_to_vmem [thread:$0]  %s8, 4096, %s52, [#allocation7], 128, 128, 8
    $region37: #{tpu_custom_call.1} parent=1 // pred_fallthru
      _
    // Predicated region
    $region38: #{tpu_custom_call.1} parent=1 // pred_check
      _
    $region39: #{tpu_custom_call.1} parent=1 // pred_check_branch
      %59 = sbr.rel (0) target = $region41
    $region40: #{tpu_custom_call.1} parent=1 // pred_region
      _
    $region41: #{tpu_custom_call.1} parent=1 // pred_fallthru
      _
    // Predicated region
    $region42: #{tpu_custom_call.1} parent=1 // pred_check
      _
    $region43: #{tpu_custom_call.1} parent=1 // pred_check_branch
      %61 = sbr.rel (0) target = $region45
    $region44: #{tpu_custom_call.1} parent=1 // pred_region
      %s63 = ssub.s32 4096, 4096
      %64 = vsyncadd [#allocation7], %s63
      %s65 = sshll.u32 [#allocation8], 4
      %s66 = int_to_ptr.vmem [resolvable:$true] %s65
      %71 = dma.hbm_to_vmem [thread:$0]  %s10, 4096, %s66, [#allocation7], 128, 128, 8
    $region45: #{tpu_custom_call.1} parent=1 // pred_fallthru
      _
    // Predicated region
    $region46: #{tpu_custom_call.1} parent=1 // pred_check
      _
    $region47: #{tpu_custom_call.1} parent=1 // pred_check_branch
      %73 = sbr.rel (0) target = $region49
    $region48: #{tpu_custom_call.1} parent=1 // pred_region
      _
    $region49: #{tpu_custom_call.1} parent=1 // pred_fallthru
      _
    // Predicated region
    $region50: #{tpu_custom_call.1} parent=1 // pred_check
      _
    $region51: #{tpu_custom_call.1} parent=1 // pred_check_branch
      %75 = sbr.rel (0) target = $region53
    $region52: #{tpu_custom_call.1} parent=1 // pred_region
      %76 = dma.done [#allocation4], 2048
    $region53: #{tpu_custom_call.1} parent=1 // pred_fallthru
      _
    // Predicated region
    $region54: #{tpu_custom_call.1} parent=1 // pred_check
      _
    $region55: #{tpu_custom_call.1} parent=1 // pred_check_branch
      %78 = sbr.rel (0) target = $region57
    $region56: #{tpu_custom_call.1} parent=1 // pred_region
      %79 = dma.done [#allocation7], 4096
    $region57: #{tpu_custom_call.1} parent=1 // pred_fallthru
      _
    // Predicated region
    $region58: #{tpu_custom_call.1} parent=1 // pred_check
      _
    $region59: #{tpu_custom_call.1} parent=1 // pred_check_branch
      %81 = sbr.rel (0) target = $region61
    $region60: #{tpu_custom_call.1} parent=1 // pred_region
      %82 = dma.done [#allocation7], 4096
    $region61: #{tpu_custom_call.1} parent=1 // pred_fallthru
      _
    %v84 = vld [vmem:[%s0] sm:$0xff]
    %v85 = vld [vmem:[%s0 + $0x8] sm:$0xff]
    %v86 = vld [vmem:[%s0 + $0x10] sm:$0xff]
    %v87 = vld [vmem:[%s0 + $0x18] sm:$0xff]
    %v88 = vpack.c.bf16 %v85, %v84
    %v89 = vpack.c.bf16 %v87, %v86
    %v90 = vld [vmem:[%s1] sm:$0xff]
    %v91 = vld [vmem:[%s1 + $0x8] sm:$0xff]
    %v92 = vld [vmem:[%s1 + $0x10] sm:$0xff]
    %v93 = vld [vmem:[%s1 + $0x18] sm:$0xff]
    %v94 = vld [vmem:[%s2] sm:$0xf]
    %vm95 = vcmask 64512
    %v97 = vsel %vm95, %v88, 0
    %v100 = vsel %vm95, %v89, 0
    %vm102 = vcmask 1043456
    %v104 = vsel %vm102, %v94, 0
    %106 = vmatprep.subr.bf16.mxu0 0
    %107 = vmatpush1.bf16.msra.mxu0 %v104
    %108 = vmatprep.subr.bf16.mxu0 0
    %109 = vmatpush1.bf16.msra.mxu0 0
    %110 = vmatprep.subr.bf16.mxu0 0
    %111 = vmatpush1.bf16.msra.mxu0 0
    %112 = vmatprep.subr.bf16.mxu0 0
    %113 = vmatpush1.bf16.msra.mxu0 0
    %114 = vmatprep.subr.bf16.mxu0 0
    %115 = vmatpush1.bf16.msra.mxu0 0
    %116 = vmatprep.subr.bf16.mxu0 0
    %117 = vmatpush1.bf16.msra.mxu0 0
    %118 = vmatprep.subr.bf16.mxu0 0
    %119 = vmatpush1.bf16.msra.mxu0 0
    %120 = vmatprep.subr.bf16.mxu0 0
    %121 = vmatpush1.bf16.msra.mxu0 0
    %122 = vmatprep.subr.bf16.mxu0 0
    %123 = vmatpush1.bf16.msra.mxu0 0
    %124 = vmatprep.subr.bf16.mxu0 0
    %125 = vmatpush1.bf16.msra.mxu0 0
    %126 = vmatprep.subr.bf16.mxu0 0
    %127 = vmatpush1.bf16.msra.mxu0 0
    %128 = vmatprep.subr.bf16.mxu0 0
    %129 = vmatpush1.bf16.msra.mxu0 0
    %130 = vmatprep.subr.bf16.mxu0 0
    %131 = vmatpush1.bf16.msra.mxu0 0
    %132 = vmatprep.subr.bf16.mxu0 0
    %133 = vmatpush1.bf16.msra.mxu0 0
    %134 = vmatprep.subr.bf16.mxu0 0
    %135 = vmatpush1.bf16.msra.mxu0 0
    %136 = vmatprep.subr.bf16.mxu0 0
    %137 = vmatpush1.bf16.msra.mxu0 0
    %138 = vmatprep.mubr.bf16.mxu0 0
    %139 = vmatmul.mubr.bf16.gmra.mrb[0].mxu0 %v97
    %v140 = vpop.f32.mrb[0].mxu0
    %v141 = vadd.f32 0.0, %v140
    %v142 = vpop.f32.mrb[0].mxu0
    %v143 = vpop.f32.mrb[0].mxu0
    %v144 = vadd.f32 0.0, %v143
    %v145 = vpop.f32.mrb[0].mxu0
    %146 = vmatprep.mubr.bf16.mxu0 0
    %147 = vmatmul.mubr.bf16.gmra.mrb[0].mxu0 %v100
    %v148 = vpop.f32.mrb[0].mxu0
    %v149 = vadd.f32 0.0, %v148
    %v150 = vpop.f32.mrb[0].mxu0
    %v151 = vpop.f32.mrb[0].mxu0
    %v152 = vadd.f32 0.0, %v151
    %v153 = vpop.f32.mrb[0].mxu0
    %154 = vdwg.mxu0
    %156 = vset.pattern.permute.xlu0 0
    %157 = vperm.xlu0 %156, %v90
    %v158 = vpop.permute.xlu0 %157
    %161 = vset.pattern.permute.xlu0 0
    %162 = vperm.xlu0 %161, %v91
    %v163 = vpop.permute.xlu0 %162
    %166 = vset.pattern.permute.xlu0 0
    %167 = vperm.xlu0 %166, %v92
    %v168 = vpop.permute.xlu0 %167
    %171 = vset.pattern.permute.xlu0 0
    %172 = vperm.xlu0 %171, %v93
    %v173 = vpop.permute.xlu0 %172
    %v175 = vmul.f32 %v141, %v158
    %v176 = vmul.f32 %v144, %v163
    %v177 = vmul.f32 %v149, %v168
    %v178 = vmul.f32 %v152, %v173
    %v179 = vld [vmem:[%s3] sm:$0x1]
    %v181 = vlaneseq
    %v182 = vshrl.u32 %v181, 7
    %v183 = vsub.s32 0, %v182
    %v184 = vrot.slane %v179, %v183
    %v186 = vadd.f32 %v175, %v184
    %v187 = vadd.f32 %v176, %v184
    %v188 = vadd.f32 %v177, %v184
    %v189 = vadd.f32 %v178, %v184
    %v190 = vmax.f32 %v186, 0.0
    %v191 = vmax.f32 %v187, 0.0
    %v192 = vmax.f32 %v188, 0.0
    %v193 = vmax.f32 %v189, 0.0
    %v194 = vpack.c.bf16 %v191, %v190
    %v195 = vpack.c.bf16 %v193, %v192
    %v196 = vld [vmem:[%s4] sm:$0xf]
    %v197 = vld [vmem:[%s4 + $0x4] sm:$0xf]
    %v198 = vld [vmem:[%s4 + $0x8] sm:$0xf]
    %v199 = vld [vmem:[%s4 + $0xc] sm:$0xf]
    %v200 = vld [vmem:[%s4 + $0x10] sm:$0xf]
    %v201 = vld [vmem:[%s4 + $0x14] sm:$0xf]
    %v202 = vld [vmem:[%s4 + $0x18] sm:$0xf]
    %v203 = vld [vmem:[%s4 + $0x1c] sm:$0xf]
    %v204 = vld [vmem:[%s4 + $0x20] sm:$0xf]
    %v205 = vld [vmem:[%s4 + $0x24] sm:$0xf]
    %v206 = vld [vmem:[%s4 + $0x28] sm:$0xf]
    %v207 = vld [vmem:[%s4 + $0x2c] sm:$0xf]
    %v208 = vld [vmem:[%s4 + $0x30] sm:$0xf]
    %v209 = vld [vmem:[%s4 + $0x34] sm:$0xf]
    %v210 = vld [vmem:[%s4 + $0x38] sm:$0xf]
    %v211 = vld [vmem:[%s4 + $0x3c] sm:$0xf]
    %v212 = vld [vmem:[%s5] sm:$0x1]
    %v214 = vlaneseq
    %v215 = vshrl.u32 %v214, 7
    %v216 = vsub.s32 0, %v215
    %v217 = vrot.slane %v212, %v216
    %v235 = vunpack.c.l.b16 %v196
    %v236 = vunpack.c.l.b16 %v197
    %v237 = vunpack.c.l.b16 %v198
    %v238 = vunpack.c.l.b16 %v199
    %v239 = vunpack.c.l.b16 %v200
    %v240 = vunpack.c.l.b16 %v201
    %v241 = vunpack.c.l.b16 %v202
    %v242 = vunpack.c.l.b16 %v203
    %v243 = vunpack.c.l.b16 %v204
    %v244 = vunpack.c.l.b16 %v205
    %v245 = vunpack.c.l.b16 %v206
    %v246 = vunpack.c.l.b16 %v207
    %v247 = vunpack.c.l.b16 %v208
    %v248 = vunpack.c.l.b16 %v209
    %v249 = vunpack.c.l.b16 %v210
    %v250 = vunpack.c.l.b16 %v211
    %v251 = vpack.c.b16 %v236, %v235
    %v252 = vpack.c.b16 %v238, %v237
    %v253 = vpack.c.b16 %v240, %v239
    %v254 = vpack.c.b16 %v242, %v241
    %v255 = vpack.c.b16 %v244, %v243
    %v256 = vpack.c.b16 %v246, %v245
    %v257 = vpack.c.b16 %v248, %v247
    %v258 = vpack.c.b16 %v250, %v249
    %267 = vmatprep.subr.bf16.mxu0 0
    %268 = vmatpush1.bf16.msra.mxu0 %v251
    %269 = vmatprep.subr.bf16.mxu0 0
    %270 = vmatpush1.bf16.msra.mxu0 %v252
    %271 = vmatprep.subr.bf16.mxu0 0
    %272 = vmatpush1.bf16.msra.mxu0 %v253
    %273 = vmatprep.subr.bf16.mxu0 0
    %274 = vmatpush1.bf16.msra.mxu0 %v254
    %275 = vmatprep.subr.bf16.mxu0 0
    %276 = vmatpush1.bf16.msra.mxu0 %v255
    %277 = vmatprep.subr.bf16.mxu0 0
    %278 = vmatpush1.bf16.msra.mxu0 %v256
    %279 = vmatprep.subr.bf16.mxu0 0
    %280 = vmatpush1.bf16.msra.mxu0 %v257
    %281 = vmatprep.subr.bf16.mxu0 0
    %282 = vmatpush1.bf16.msra.mxu0 %v258
    %283 = vmatprep.subr.bf16.mxu0 0
    %284 = vmatpush1.bf16.msra.mxu0 0
    %285 = vmatprep.subr.bf16.mxu0 0
    %286 = vmatpush1.bf16.msra.mxu0 0
    %287 = vmatprep.subr.bf16.mxu0 0
    %288 = vmatpush1.bf16.msra.mxu0 0
    %289 = vmatprep.subr.bf16.mxu0 0
    %290 = vmatpush1.bf16.msra.mxu0 0
    %291 = vmatprep.subr.bf16.mxu0 0
    %292 = vmatpush1.bf16.msra.mxu0 0
    %293 = vmatprep.subr.bf16.mxu0 0
    %294 = vmatpush1.bf16.msra.mxu0 0
    %295 = vmatprep.subr.bf16.mxu0 0
    %296 = vmatpush1.bf16.msra.mxu0 0
    %297 = vmatprep.subr.bf16.mxu0 0
    %298 = vmatpush1.bf16.msra.mxu0 0
    %299 = vmatprep.mubr.bf16.mxu0 0
    %300 = vmatmul.mubr.bf16.gmra.mrb[0].mxu0 %v194
    %v301 = vpop.f32.mrb[0].mxu0
    %v302 = vadd.f32 %v217, %v301
    %v303 = vpop.f32.mrb[0].mxu0
    %v304 = vpop.f32.mrb[0].mxu0
    %v305 = vadd.f32 %v217, %v304
    %v306 = vpop.f32.mrb[0].mxu0
    %307 = vmatprep.mubr.bf16.mxu0 0
    %308 = vmatmul.mubr.bf16.gmra.mrb[0].mxu0 %v195
    %v309 = vpop.f32.mrb[0].mxu0
    %v310 = vadd.f32 %v217, %v309
    %v311 = vpop.f32.mrb[0].mxu0
    %v312 = vpop.f32.mrb[0].mxu0
    %v313 = vadd.f32 %v217, %v312
    %v314 = vpop.f32.mrb[0].mxu0
    %315 = vdwg.mxu0
    %v316 = vmax.f32 %v302, 0.0
    %v317 = vmax.f32 %v305, 0.0
    %v318 = vmax.f32 %v310, 0.0
    %v319 = vmax.f32 %v313, 0.0
    %v320 = vpack.c.bf16 %v317, %v316
    %v321 = vpack.c.bf16 %v319, %v318
    %v322 = vld [vmem:[#allocation3] sm:$0xff]
    %v323 = vld [vmem:[#allocation3 + $0x8] sm:$0xff]
    %v324 = vld [vmem:[#allocation3 + $0x10] sm:$0xff]
    %v325 = vld [vmem:[#allocation3 + $0x18] sm:$0xff]
    %v326 = vld [vmem:[#allocation3 + $0x20] sm:$0xff]
    %v327 = vld [vmem:[#allocation3 + $0x28] sm:$0xff]
    %v328 = vld [vmem:[#allocation3 + $0x30] sm:$0xff]
    %v329 = vld [vmem:[#allocation3 + $0x38] sm:$0xff]
    %v330 = vld [vmem:[#allocation3 + $0x40] sm:$0xff]
    %v331 = vld [vmem:[#allocation3 + $0x48] sm:$0xff]
    %v332 = vld [vmem:[#allocation3 + $0x50] sm:$0xff]
    %v333 = vld [vmem:[#allocation3 + $0x58] sm:$0xff]
    %v334 = vld [vmem:[#allocation3 + $0x60] sm:$0xff]
    %v335 = vld [vmem:[#allocation3 + $0x68] sm:$0xff]
    %v336 = vld [vmem:[#allocation3 + $0x70] sm:$0xff]
    %v337 = vld [vmem:[#allocation3 + $0x78] sm:$0xff]
    %v338 = vld [vmem:[%s7] sm:$0x3]
    %v340 = vlaneseq
    %v341 = vshrl.u32 %v340, 7
    %v342 = vsub.s32 0, %v341
    %v343 = vrot.slane %v338, %v342
    %v344 = vlaneseq
    %v345 = vshrl.u32 %v344, 7
    %v346 = vsub.s32 1, %v345
    %v347 = vrot.slane %v338, %v346
    %v366 = vunpack.c.l.b16 %v322
    %v367 = vunpack.c.h.b16 %v322
    %v368 = vunpack.c.l.b16 %v323
    %v369 = vunpack.c.h.b16 %v323
    %v370 = vunpack.c.l.b16 %v324
    %v371 = vunpack.c.h.b16 %v324
    %v372 = vunpack.c.l.b16 %v325
    %v373 = vunpack.c.h.b16 %v325
    %v374 = vunpack.c.l.b16 %v326
    %v375 = vunpack.c.h.b16 %v326
    %v376 = vunpack.c.l.b16 %v327
    %v377 = vunpack.c.h.b16 %v327
    %v378 = vunpack.c.l.b16 %v328
    %v379 = vunpack.c.h.b16 %v328
    %v380 = vunpack.c.l.b16 %v329
    %v381 = vunpack.c.h.b16 %v329
    %v382 = vunpack.c.l.b16 %v330
    %v383 = vunpack.c.h.b16 %v330
    %v384 = vunpack.c.l.b16 %v331
    %v385 = vunpack.c.h.b16 %v331
    %v386 = vunpack.c.l.b16 %v332
    %v387 = vunpack.c.h.b16 %v332
    %v388 = vunpack.c.l.b16 %v333
    %v389 = vunpack.c.h.b16 %v333
    %v390 = vunpack.c.l.b16 %v334
    %v391 = vunpack.c.h.b16 %v334
    %v392 = vunpack.c.l.b16 %v335
    %v393 = vunpack.c.h.b16 %v335
    %v394 = vunpack.c.l.b16 %v336
    %v395 = vunpack.c.h.b16 %v336
    %v396 = vunpack.c.l.b16 %v337
    %v397 = vunpack.c.h.b16 %v337
    %v398 = vpack.c.b16 %v368, %v366
    %v399 = vpack.c.b16 %v369, %v367
    %v400 = vpack.c.b16 %v372, %v370
    %v401 = vpack.c.b16 %v373, %v371
    %v402 = vpack.c.b16 %v376, %v374
    %v403 = vpack.c.b16 %v377, %v375
    %v404 = vpack.c.b16 %v380, %v378
    %v405 = vpack.c.b16 %v381, %v379
    %v406 = vpack.c.b16 %v384, %v382
    %v407 = vpack.c.b16 %v385, %v383
    %v408 = vpack.c.b16 %v388, %v386
    %v409 = vpack.c.b16 %v389, %v387
    %v410 = vpack.c.b16 %v392, %v390
    %v411 = vpack.c.b16 %v393, %v391
    %v412 = vpack.c.b16 %v396, %v394
    %v413 = vpack.c.b16 %v397, %v395
    %430 = vmatprep.subr.bf16.mxu0 %v399
    %431 = vmatpush1.bf16.msra.mxu0 %v398
    %432 = vmatprep.subr.bf16.mxu0 %v401
    %433 = vmatpush1.bf16.msra.mxu0 %v400
    %434 = vmatprep.subr.bf16.mxu0 %v403
    %435 = vmatpush1.bf16.msra.mxu0 %v402
    %436 = vmatprep.subr.bf16.mxu0 %v405
    %437 = vmatpush1.bf16.msra.mxu0 %v404
    %438 = vmatprep.subr.bf16.mxu0 %v407
    %439 = vmatpush1.bf16.msra.mxu0 %v406
    %440 = vmatprep.subr.bf16.mxu0 %v409
    %441 = vmatpush1.bf16.msra.mxu0 %v408
    %442 = vmatprep.subr.bf16.mxu0 %v411
    %443 = vmatpush1.bf16.msra.mxu0 %v410
    %444 = vmatprep.subr.bf16.mxu0 %v413
    %445 = vmatpush1.bf16.msra.mxu0 %v412
    %446 = vmatprep.subr.bf16.mxu0 0
    %447 = vmatpush1.bf16.msra.mxu0 0
    %448 = vmatprep.subr.bf16.mxu0 0
    %449 = vmatpush1.bf16.msra.mxu0 0
    %450 = vmatprep.subr.bf16.mxu0 0
    %451 = vmatpush1.bf16.msra.mxu0 0
    %452 = vmatprep.subr.bf16.mxu0 0
    %453 = vmatpush1.bf16.msra.mxu0 0
    %454 = vmatprep.subr.bf16.mxu0 0
    %455 = vmatpush1.bf16.msra.mxu0 0
    %456 = vmatprep.subr.bf16.mxu0 0
    %457 = vmatpush1.bf16.msra.mxu0 0
    %458 = vmatprep.subr.bf16.mxu0 0
    %459 = vmatpush1.bf16.msra.mxu0 0
    %460 = vmatprep.subr.bf16.mxu0 0
    %461 = vmatpush1.bf16.msra.mxu0 0
    %462 = vmatprep.mubr.bf16.mxu0 0
    %463 = vmatmul.mubr.bf16.gmra.mrb[0].mxu0 %v320
    %v464 = vpop.f32.mrb[0].mxu0
    %v465 = vadd.f32 %v343, %v464
    %v466 = vpop.f32.mrb[0].mxu0
    %v467 = vadd.f32 %v347, %v466
    %v468 = vpop.f32.mrb[0].mxu0
    %v469 = vadd.f32 %v343, %v468
    %v470 = vpop.f32.mrb[0].mxu0
    %v471 = vadd.f32 %v347, %v470
    %472 = vmatprep.mubr.bf16.mxu0 0
    %473 = vmatmul.mubr.bf16.gmra.mrb[0].mxu0 %v321
    %v474 = vpop.f32.mrb[0].mxu0
    %v475 = vadd.f32 %v343, %v474
    %v476 = vpop.f32.mrb[0].mxu0
    %v477 = vadd.f32 %v347, %v476
    %v478 = vpop.f32.mrb[0].mxu0
    %v479 = vadd.f32 %v343, %v478
    %v480 = vpop.f32.mrb[0].mxu0
    %v481 = vadd.f32 %v347, %v480
    %482 = vdwg.mxu0
    %v483 = vmax.f32 %v465, %v469
    %v484 = vrot.slane %v483, 4
    %v485 = vmax.f32 %v483, %v484
    %v486 = vrot.slane %v485, 2
    %v487 = vmax.f32 %v485, %v486
    %v488 = vrot.slane %v487, 1
    %v489 = vmax.f32 %v487, %v488
    %v490 = vmax.f32 %v467, %v471
    %v491 = vrot.slane %v490, 4
    %v492 = vmax.f32 %v490, %v491
    %v493 = vrot.slane %v492, 2
    %v494 = vmax.f32 %v492, %v493
    %v495 = vrot.slane %v494, 1
    %v496 = vmax.f32 %v494, %v495
    %v497 = vmax.f32 %v475, %v479
    %v498 = vrot.slane %v497, 4
    %v499 = vmax.f32 %v497, %v498
    %v500 = vrot.slane %v499, 2
    %v501 = vmax.f32 %v499, %v500
    %v502 = vrot.slane %v501, 1
    %v503 = vmax.f32 %v501, %v502
    %v504 = vmax.f32 %v477, %v481
    %v505 = vrot.slane %v504, 4
    %v506 = vmax.f32 %v504, %v505
    %v507 = vrot.slane %v506, 2
    %v508 = vmax.f32 %v506, %v507
    %v509 = vrot.slane %v508, 1
    %v510 = vmax.f32 %v508, %v509
    %p511 = scmp.eq.s32.totalorder 0, 0
    // Predicated region
    $region62: #{tpu_custom_call.1} parent=1 // pred_check
      %p512 = pneg %p511
    $region63: #{tpu_custom_call.1} parent=1 // pred_check_branch
      %514 = sbr.rel (%p512) target = $region65
    $region64: #{tpu_custom_call.1} parent=1 // pred_region
      %515 = vst [vmem:[#allocation2] sm:$0xf] -inf
    $region65: #{tpu_custom_call.1} parent=1 // pred_fallthru
      _
    %v516 = vld [vmem:[#allocation2] sm:$0xf]
    %v521 = vcombine.low %v489, %v496
    %v523 = vunpack.c.l.s4 1983009808
    %v524 = vunpack.c.0.s8 %v523
    %v525 = vlaneseq
    %v526 = vshrl.u32 %v525, 7
    %v527 = vsub.s32 %v524, %v526
    %v528 = vrot.slane %v521, %v527
    %v529 = vcombine.low %v503, %v510
    %v531 = vunpack.c.l.s4 1983009808
    %v532 = vunpack.c.0.s8 %v531
    %v533 = vlaneseq
    %v534 = vshrl.u32 %v533, 7
    %v535 = vsub.s32 %v532, %v534
    %v536 = vrot.slane %v529, %v535
    %vm537 = vcmask 1044484
    %v538 = vsel %vm537, %v528, %v528
    %vm539 = vcmask 1046534
    %v540 = vsel %vm539, %v528, %v538
    %v541 = vrot.slane %v536, 7
    %vm542 = vcmask 1041409
    %v543 = vsel %vm542, %v541, %v540
    %vm544 = vcmask 1043459
    %v545 = vsel %vm544, %v541, %v543
    %vm546 = vcmask 1045509
    %v547 = vsel %vm546, %v541, %v545
    %vm548 = vcmask 1047559
    %v549 = vsel %vm548, %v541, %v547
    %v551 = vmax.f32 %v516, %v549
    %552 = vst [vmem:[#allocation2] sm:$0xf] %v551
    // Predicated region
    $region66: #{tpu_custom_call.1} parent=1 // pred_check
      %p553 = pneg %p511
    $region67: #{tpu_custom_call.1} parent=1 // pred_check_branch
      %555 = sbr.rel (%p553) target = $region69
    $region68: #{tpu_custom_call.1} parent=1 // pred_region
      %v556 = vld [vmem:[#allocation2] sm:$0xf]
      %v559 = vunpack.c.l.s4 1983009808
      %v560 = vunpack.c.0.s8 %v559
      %v561 = vlaneseq
      %v562 = vshrl.u32 %v561, 7
      %v563 = vsub.s32 %v560, %v562
      %v564 = vrot.slane %v556, %v563
      %v565 = vcombine.high %v564, %v564
      %v568 = vpack.c.bf16 %v564, %v564
      %v569 = vpack.c.bf16 %v565, %v565
      %v570 = vld [vmem:[#allocation6] sm:$0xff]
      %v571 = vld [vmem:[#allocation6 + $0x8] sm:$0xff]
      %v572 = vld [vmem:[#allocation6 + $0x10] sm:$0xff]
      %v573 = vld [vmem:[#allocation6 + $0x18] sm:$0xff]
      %v574 = vld [vmem:[#allocation6 + $0x20] sm:$0xff]
      %v575 = vld [vmem:[#allocation6 + $0x28] sm:$0xff]
      %v576 = vld [vmem:[#allocation6 + $0x30] sm:$0xff]
      %v577 = vld [vmem:[#allocation6 + $0x38] sm:$0xff]
      %v578 = vld [vmem:[#allocation6 + $0x40] sm:$0xff]
      %v579 = vld [vmem:[#allocation6 + $0x48] sm:$0xff]
      %v580 = vld [vmem:[#allocation6 + $0x50] sm:$0xff]
      %v581 = vld [vmem:[#allocation6 + $0x58] sm:$0xff]
      %v582 = vld [vmem:[#allocation6 + $0x60] sm:$0xff]
      %v583 = vld [vmem:[#allocation6 + $0x68] sm:$0xff]
      %v584 = vld [vmem:[#allocation6 + $0x70] sm:$0xff]
      %v585 = vld [vmem:[#allocation6 + $0x78] sm:$0xff]
      %v586 = vld [vmem:[#allocation6 + $0x80] sm:$0xff]
      %v587 = vld [vmem:[#allocation6 + $0x88] sm:$0xff]
      %v588 = vld [vmem:[#allocation6 + $0x90] sm:$0xff]
      %v589 = vld [vmem:[#allocation6 + $0x98] sm:$0xff]
      %v590 = vld [vmem:[#allocation6 + $0xa0] sm:$0xff]
      %v591 = vld [vmem:[#allocation6 + $0xa8] sm:$0xff]
      %v592 = vld [vmem:[#allocation6 + $0xb0] sm:$0xff]
      %v593 = vld [vmem:[#allocation6 + $0xb8] sm:$0xff]
      %v594 = vld [vmem:[#allocation6 + $0xc0] sm:$0xff]
      %v595 = vld [vmem:[#allocation6 + $0xc8] sm:$0xff]
      %v596 = vld [vmem:[#allocation6 + $0xd0] sm:$0xff]
      %v597 = vld [vmem:[#allocation6 + $0xd8] sm:$0xff]
      %v598 = vld [vmem:[#allocation6 + $0xe0] sm:$0xff]
      %v599 = vld [vmem:[#allocation6 + $0xe8] sm:$0xff]
      %v600 = vld [vmem:[#allocation6 + $0xf0] sm:$0xff]
      %v601 = vld [vmem:[#allocation6 + $0xf8] sm:$0xff]
      %v602 = vld [vmem:[%s9] sm:$0x3]
      %v604 = vlaneseq
      %v605 = vshrl.u32 %v604, 7
      %v606 = vsub.s32 0, %v605
      %v607 = vrot.slane %v602, %v606
      %v608 = vlaneseq
      %v609 = vshrl.u32 %v608, 7
      %v610 = vsub.s32 1, %v609
      %v611 = vrot.slane %v602, %v610
      %v646 = vunpack.c.l.b16 %v570
      %v647 = vunpack.c.h.b16 %v570
      %v648 = vunpack.c.l.b16 %v571
      %v649 = vunpack.c.h.b16 %v571
      %v650 = vunpack.c.l.b16 %v572
      %v651 = vunpack.c.h.b16 %v572
      %v652 = vunpack.c.l.b16 %v573
      %v653 = vunpack.c.h.b16 %v573
      %v654 = vunpack.c.l.b16 %v574
      %v655 = vunpack.c.h.b16 %v574
      %v656 = vunpack.c.l.b16 %v575
      %v657 = vunpack.c.h.b16 %v575
      %v658 = vunpack.c.l.b16 %v576
      %v659 = vunpack.c.h.b16 %v576
      %v660 = vunpack.c.l.b16 %v577
      %v661 = vunpack.c.h.b16 %v577
      %v662 = vunpack.c.l.b16 %v578
      %v663 = vunpack.c.h.b16 %v578
      %v664 = vunpack.c.l.b16 %v579
      %v665 = vunpack.c.h.b16 %v579
      %v666 = vunpack.c.l.b16 %v580
      %v667 = vunpack.c.h.b16 %v580
      %v668 = vunpack.c.l.b16 %v581
      %v669 = vunpack.c.h.b16 %v581
      %v670 = vunpack.c.l.b16 %v582
      %v671 = vunpack.c.h.b16 %v582
      %v672 = vunpack.c.l.b16 %v583
      %v673 = vunpack.c.h.b16 %v583
      %v674 = vunpack.c.l.b16 %v584
      %v675 = vunpack.c.h.b16 %v584
      %v676 = vunpack.c.l.b16 %v585
      %v677 = vunpack.c.h.b16 %v585
      %v678 = vunpack.c.l.b16 %v586
      %v679 = vunpack.c.h.b16 %v586
      %v680 = vunpack.c.l.b16 %v587
      %v681 = vunpack.c.h.b16 %v587
      %v682 = vunpack.c.l.b16 %v588
      %v683 = vunpack.c.h.b16 %v588
      %v684 = vunpack.c.l.b16 %v589
      %v685 = vunpack.c.h.b16 %v589
      %v686 = vunpack.c.l.b16 %v590
      %v687 = vunpack.c.h.b16 %v590
      %v688 = vunpack.c.l.b16 %v591
      %v689 = vunpack.c.h.b16 %v591
      %v690 = vunpack.c.l.b16 %v592
      %v691 = vunpack.c.h.b16 %v592
      %v692 = vunpack.c.l.b16 %v593
      %v693 = vunpack.c.h.b16 %v593
      %v694 = vunpack.c.l.b16 %v594
      %v695 = vunpack.c.h.b16 %v594
      %v696 = vunpack.c.l.b16 %v595
      %v697 = vunpack.c.h.b16 %v595
      %v698 = vunpack.c.l.b16 %v596
      %v699 = vunpack.c.h.b16 %v596
      %v700 = vunpack.c.l.b16 %v597
      %v701 = vunpack.c.h.b16 %v597
      %v702 = vunpack.c.l.b16 %v598
      %v703 = vunpack.c.h.b16 %v598
      %v704 = vunpack.c.l.b16 %v599
      %v705 = vunpack.c.h.b16 %v599
      %v706 = vunpack.c.l.b16 %v600
      %v707 = vunpack.c.h.b16 %v600
      %v708 = vunpack.c.l.b16 %v601
      %v709 = vunpack.c.h.b16 %v601
      %v710 = vpack.c.b16 %v648, %v646
      %v711 = vpack.c.b16 %v649, %v647
      %v712 = vpack.c.b16 %v652, %v650
      %v713 = vpack.c.b16 %v653, %v651
      %v714 = vpack.c.b16 %v656, %v654
      %v715 = vpack.c.b16 %v657, %v655
      %v716 = vpack.c.b16 %v660, %v658
      %v717 = vpack.c.b16 %v661, %v659
      %v718 = vpack.c.b16 %v664, %v662
      %v719 = vpack.c.b16 %v665, %v663
      %v720 = vpack.c.b16 %v668, %v666
      %v721 = vpack.c.b16 %v669, %v667
      %v722 = vpack.c.b16 %v672, %v670
      %v723 = vpack.c.b16 %v673, %v671
      %v724 = vpack.c.b16 %v676, %v674
      %v725 = vpack.c.b16 %v677, %v675
      %v726 = vpack.c.b16 %v680, %v678
      %v727 = vpack.c.b16 %v681, %v679
      %v728 = vpack.c.b16 %v684, %v682
      %v729 = vpack.c.b16 %v685, %v683
      %v730 = vpack.c.b16 %v688, %v686
      %v731 = vpack.c.b16 %v689, %v687
      %v732 = vpack.c.b16 %v692, %v690
      %v733 = vpack.c.b16 %v693, %v691
      %v734 = vpack.c.b16 %v696, %v694
      %v735 = vpack.c.b16 %v697, %v695
      %v736 = vpack.c.b16 %v700, %v698
      %v737 = vpack.c.b16 %v701, %v699
      %v738 = vpack.c.b16 %v704, %v702
      %v739 = vpack.c.b16 %v705, %v703
      %v740 = vpack.c.b16 %v708, %v706
      %v741 = vpack.c.b16 %v709, %v707
      %774 = vmatprep.subr.bf16.mxu0 %v711
      %775 = vmatpush1.bf16.msra.mxu0 %v710
      %776 = vmatprep.subr.bf16.mxu0 %v713
      %777 = vmatpush1.bf16.msra.mxu0 %v712
      %778 = vmatprep.subr.bf16.mxu0 %v715
      %779 = vmatpush1.bf16.msra.mxu0 %v714
      %780 = vmatprep.subr.bf16.mxu0 %v717
      %781 = vmatpush1.bf16.msra.mxu0 %v716
      %782 = vmatprep.subr.bf16.mxu0 %v719
      %783 = vmatpush1.bf16.msra.mxu0 %v718
      %784 = vmatprep.subr.bf16.mxu0 %v721
      %785 = vmatpush1.bf16.msra.mxu0 %v720
      %786 = vmatprep.subr.bf16.mxu0 %v723
      %787 = vmatpush1.bf16.msra.mxu0 %v722
      %788 = vmatprep.subr.bf16.mxu0 %v725
      %789 = vmatpush1.bf16.msra.mxu0 %v724
      %790 = vmatprep.subr.bf16.mxu0 %v727
      %791 = vmatpush1.bf16.msra.mxu0 %v726
      %792 = vmatprep.subr.bf16.mxu0 %v729
      %793 = vmatpush1.bf16.msra.mxu0 %v728
      %794 = vmatprep.subr.bf16.mxu0 %v731
      %795 = vmatpush1.bf16.msra.mxu0 %v730
      %796 = vmatprep.subr.bf16.mxu0 %v733
      %797 = vmatpush1.bf16.msra.mxu0 %v732
      %798 = vmatprep.subr.bf16.mxu0 %v735
      %799 = vmatpush1.bf16.msra.mxu0 %v734
      %800 = vmatprep.subr.bf16.mxu0 %v737
      %801 = vmatpush1.bf16.msra.mxu0 %v736
      %802 = vmatprep.subr.bf16.mxu0 %v739
      %803 = vmatpush1.bf16.msra.mxu0 %v738
      %804 = vmatprep.subr.bf16.mxu0 %v741
      %805 = vmatpush1.bf16.msra.mxu0 %v740
      %806 = vmatprep.mubr.bf16.mxu0 %v569
      %807 = vmatmul.mubr.bf16.gmra.mrb[0].mxu0 %v568
      %v808 = vpop.f32.mrb[0].mxu0
      %v809 = vadd.f32 %v607, %v808
      %v810 = vpop.f32.mrb[0].mxu0
      %v811 = vadd.f32 %v611, %v810
      %v812 = vpop.f32.mrb[0].mxu0
      %v813 = vpop.f32.mrb[0].mxu0
      %814 = vdwg.mxu0
      %v815 = vmax.f32 %v809, 0.0
      %v816 = vmax.f32 %v811, 0.0
      %v817 = vpack.c.bf16 %v815, %v815
      %v818 = vpack.c.bf16 %v816, %v816
      %v819 = vld [vmem:[#allocation8] sm:$0xff]
      %v820 = vld [vmem:[#allocation8 + $0x8] sm:$0xff]
      %v821 = vld [vmem:[#allocation8 + $0x10] sm:$0xff]
      %v822 = vld [vmem:[#allocation8 + $0x18] sm:$0xff]
      %v823 = vld [vmem:[#allocation8 + $0x20] sm:$0xff]
      %v824 = vld [vmem:[#allocation8 + $0x28] sm:$0xff]
      %v825 = vld [vmem:[#allocation8 + $0x30] sm:$0xff]
      %v826 = vld [vmem:[#allocation8 + $0x38] sm:$0xff]
      %v827 = vld [vmem:[#allocation8 + $0x40] sm:$0xff]
      %v828 = vld [vmem:[#allocation8 + $0x48] sm:$0xff]
      %v829 = vld [vmem:[#allocation8 + $0x50] sm:$0xff]
      %v830 = vld [vmem:[#allocation8 + $0x58] sm:$0xff]
      %v831 = vld [vmem:[#allocation8 + $0x60] sm:$0xff]
      %v832 = vld [vmem:[#allocation8 + $0x68] sm:$0xff]
      %v833 = vld [vmem:[#allocation8 + $0x70] sm:$0xff]
      %v834 = vld [vmem:[#allocation8 + $0x78] sm:$0xff]
      %v835 = vld [vmem:[#allocation8 + $0x80] sm:$0xff]
      %v836 = vld [vmem:[#allocation8 + $0x88] sm:$0xff]
      %v837 = vld [vmem:[#allocation8 + $0x90] sm:$0xff]
      %v838 = vld [vmem:[#allocation8 + $0x98] sm:$0xff]
      %v839 = vld [vmem:[#allocation8 + $0xa0] sm:$0xff]
      %v840 = vld [vmem:[#allocation8 + $0xa8] sm:$0xff]
      %v841 = vld [vmem:[#allocation8 + $0xb0] sm:$0xff]
      %v842 = vld [vmem:[#allocation8 + $0xb8] sm:$0xff]
      %v843 = vld [vmem:[#allocation8 + $0xc0] sm:$0xff]
      %v844 = vld [vmem:[#allocation8 + $0xc8] sm:$0xff]
      %v845 = vld [vmem:[#allocation8 + $0xd0] sm:$0xff]
      %v846 = vld [vmem:[#allocation8 + $0xd8] sm:$0xff]
      %v847 = vld [vmem:[#allocation8 + $0xe0] sm:$0xff]
      %v848 = vld [vmem:[#allocation8 + $0xe8] sm:$0xff]
      %v849 = vld [vmem:[#allocation8 + $0xf0] sm:$0xff]
      %v850 = vld [vmem:[#allocation8 + $0xf8] sm:$0xff]
      %v851 = vld [vmem:[%s11] sm:$0x3]
      %v853 = vlaneseq
      %v854 = vshrl.u32 %v853, 7
      %v855 = vsub.s32 0, %v854
      %v856 = vrot.slane %v851, %v855
      %v857 = vlaneseq
      %v858 = vshrl.u32 %v857, 7
      %v859 = vsub.s32 1, %v858
      %v860 = vrot.slane %v851, %v859
      %v895 = vunpack.c.l.b16 %v819
      %v896 = vunpack.c.h.b16 %v819
      %v897 = vunpack.c.l.b16 %v820
      %v898 = vunpack.c.h.b16 %v820
      %v899 = vunpack.c.l.b16 %v821
      %v900 = vunpack.c.h.b16 %v821
      %v901 = vunpack.c.l.b16 %v822
      %v902 = vunpack.c.h.b16 %v822
      %v903 = vunpack.c.l.b16 %v823
      %v904 = vunpack.c.h.b16 %v823
      %v905 = vunpack.c.l.b16 %v824
      %v906 = vunpack.c.h.b16 %v824
      %v907 = vunpack.c.l.b16 %v825
      %v908 = vunpack.c.h.b16 %v825
      %v909 = vunpack.c.l.b16 %v826
      %v910 = vunpack.c.h.b16 %v826
      %v911 = vunpack.c.l.b16 %v827
      %v912 = vunpack.c.h.b16 %v827
      %v913 = vunpack.c.l.b16 %v828
      %v914 = vunpack.c.h.b16 %v828
      %v915 = vunpack.c.l.b16 %v829
      %v916 = vunpack.c.h.b16 %v829
      %v917 = vunpack.c.l.b16 %v830
      %v918 = vunpack.c.h.b16 %v830
      %v919 = vunpack.c.l.b16 %v831
      %v920 = vunpack.c.h.b16 %v831
      %v921 = vunpack.c.l.b16 %v832
      %v922 = vunpack.c.h.b16 %v832
      %v923 = vunpack.c.l.b16 %v833
      %v924 = vunpack.c.h.b16 %v833
      %v925 = vunpack.c.l.b16 %v834
      %v926 = vunpack.c.h.b16 %v834
      %v927 = vunpack.c.l.b16 %v835
      %v928 = vunpack.c.h.b16 %v835
      %v929 = vunpack.c.l.b16 %v836
      %v930 = vunpack.c.h.b16 %v836
      %v931 = vunpack.c.l.b16 %v837
      %v932 = vunpack.c.h.b16 %v837
      %v933 = vunpack.c.l.b16 %v838
      %v934 = vunpack.c.h.b16 %v838
      %v935 = vunpack.c.l.b16 %v839
      %v936 = vunpack.c.h.b16 %v839
      %v937 = vunpack.c.l.b16 %v840
      %v938 = vunpack.c.h.b16 %v840
      %v939 = vunpack.c.l.b16 %v841
      %v940 = vunpack.c.h.b16 %v841
      %v941 = vunpack.c.l.b16 %v842
      %v942 = vunpack.c.h.b16 %v842
      %v943 = vunpack.c.l.b16 %v843
      %v944 = vunpack.c.h.b16 %v843
      %v945 = vunpack.c.l.b16 %v844
      %v946 = vunpack.c.h.b16 %v844
      %v947 = vunpack.c.l.b16 %v845
      %v948 = vunpack.c.h.b16 %v845
      %v949 = vunpack.c.l.b16 %v846
      %v950 = vunpack.c.h.b16 %v846
      %v951 = vunpack.c.l.b16 %v847
      %v952 = vunpack.c.h.b16 %v847
      %v953 = vunpack.c.l.b16 %v848
      %v954 = vunpack.c.h.b16 %v848
      %v955 = vunpack.c.l.b16 %v849
      %v956 = vunpack.c.h.b16 %v849
      %v957 = vunpack.c.l.b16 %v850
      %v958 = vunpack.c.h.b16 %v850
      %v959 = vpack.c.b16 %v897, %v895
      %v960 = vpack.c.b16 %v898, %v896
      %v961 = vpack.c.b16 %v901, %v899
      %v962 = vpack.c.b16 %v902, %v900
      %v963 = vpack.c.b16 %v905, %v903
      %v964 = vpack.c.b16 %v906, %v904
      %v965 = vpack.c.b16 %v909, %v907
      %v966 = vpack.c.b16 %v910, %v908
      %v967 = vpack.c.b16 %v913, %v911
      %v968 = vpack.c.b16 %v914, %v912
      %v969 = vpack.c.b16 %v917, %v915
      %v970 = vpack.c.b16 %v918, %v916
      %v971 = vpack.c.b16 %v921, %v919
      %v972 = vpack.c.b16 %v922, %v920
      %v973 = vpack.c.b16 %v925, %v923
      %v974 = vpack.c.b16 %v926, %v924
      %v975 = vpack.c.b16 %v929, %v927
      %v976 = vpack.c.b16 %v930, %v928
      %v977 = vpack.c.b16 %v933, %v931
      %v978 = vpack.c.b16 %v934, %v932
      %v979 = vpack.c.b16 %v937, %v935
      %v980 = vpack.c.b16 %v938, %v936
      %v981 = vpack.c.b16 %v941, %v939
      %v982 = vpack.c.b16 %v942, %v940
      %v983 = vpack.c.b16 %v945, %v943
      %v984 = vpack.c.b16 %v946, %v944
      %v985 = vpack.c.b16 %v949, %v947
      %v986 = vpack.c.b16 %v950, %v948
      %v987 = vpack.c.b16 %v953, %v951
      %v988 = vpack.c.b16 %v954, %v952
      %v989 = vpack.c.b16 %v957, %v955
      %v990 = vpack.c.b16 %v958, %v956
      %1023 = vmatprep.subr.bf16.mxu0 %v960
      %1024 = vmatpush1.bf16.msra.mxu0 %v959
      %1025 = vmatprep.subr.bf16.mxu0 %v962
      %1026 = vmatpush1.bf16.msra.mxu0 %v961
      %1027 = vmatprep.subr.bf16.mxu0 %v964
      %1028 = vmatpush1.bf16.msra.mxu0 %v963
      %1029 = vmatprep.subr.bf16.mxu0 %v966
      %1030 = vmatpush1.bf16.msra.mxu0 %v965
      %1031 = vmatprep.subr.bf16.mxu0 %v968
      %1032 = vmatpush1.bf16.msra.mxu0 %v967
      %1033 = vmatprep.subr.bf16.mxu0 %v970
      %1034 = vmatpush1.bf16.msra.mxu0 %v969
      %1035 = vmatprep.subr.bf16.mxu0 %v972
      %1036 = vmatpush1.bf16.msra.mxu0 %v971
      %1037 = vmatprep.subr.bf16.mxu0 %v974
      %1038 = vmatpush1.bf16.msra.mxu0 %v973
      %1039 = vmatprep.subr.bf16.mxu0 %v976
      %1040 = vmatpush1.bf16.msra.mxu0 %v975
      %1041 = vmatprep.subr.bf16.mxu0 %v978
      %1042 = vmatpush1.bf16.msra.mxu0 %v977
      %1043 = vmatprep.subr.bf16.mxu0 %v980
      %1044 = vmatpush1.bf16.msra.mxu0 %v979
      %1045 = vmatprep.subr.bf16.mxu0 %v982
      %1046 = vmatpush1.bf16.msra.mxu0 %v981
      %1047 = vmatprep.subr.bf16.mxu0 %v984
      %1048 = vmatpush1.bf16.msra.mxu0 %v983
      %1049 = vmatprep.subr.bf16.mxu0 %v986
      %1050 = vmatpush1.bf16.msra.mxu0 %v985
      %1051 = vmatprep.subr.bf16.mxu0 %v988
      %1052 = vmatpush1.bf16.msra.mxu0 %v987
      %1053 = vmatprep.subr.bf16.mxu0 %v990
      %1054 = vmatpush1.bf16.msra.mxu0 %v989
      %1055 = vmatprep.mubr.bf16.mxu0 %v818
      %1056 = vmatmul.mubr.bf16.gmra.mrb[0].mxu0 %v817
      %v1057 = vpop.f32.mrb[0].mxu0
      %v1058 = vadd.f32 %v856, %v1057
      %v1059 = vpop.f32.mrb[0].mxu0
      %v1060 = vadd.f32 %v860, %v1059
      %v1061 = vpop.f32.mrb[0].mxu0
      %v1062 = vpop.f32.mrb[0].mxu0
      %1063 = vdwg.mxu0
      %v1066 = vcombine.low %v1058, %v1060
      %v1068 = vunpack.c.l.s4 1983009808
      %v1069 = vunpack.c.0.s8 %v1068
      %v1070 = vlaneseq
      %v1071 = vshrl.u32 %v1070, 7
      %v1072 = vsub.s32 %v1069, %v1071
      %v1073 = vrot.slane %v1066, %v1072
      %1075 = vst [vmem:[#allocation9] sm:$0xf] %v1073
    $region69: #{tpu_custom_call.1} parent=1 // pred_fallthru
      _
    // Predicated region
    $region70: #{tpu_custom_call.1} parent=1 // pred_check
      _
    $region71: #{tpu_custom_call.1} parent=1 // pred_check_branch
      %1077 = sbr.rel (0) target = $region73
    $region72: #{tpu_custom_call.1} parent=1 // pred_region
      %s1079 = ssub.s32 64, 64
      %1080 = vsyncadd [#allocation5], %s1079
      %s1082 = sshll.u32 [#allocation9], 4
      %s1083 = int_to_ptr.vmem [resolvable:$true] %s1082
      %1085 = dma.vmem_to_hbm [thread:$0]  %s1083, 64, %s12, [#allocation5]
    $region73: #{tpu_custom_call.1} parent=1 // pred_fallthru
      _
    // Predicated region
    $region74: #{tpu_custom_call.1} parent=1 // pred_check
      _
    $region75: #{tpu_custom_call.1} parent=1 // pred_check_branch
      %1087 = sbr.rel (0) target = $region77
    $region76: #{tpu_custom_call.1} parent=1 // pred_region
      %1088 = dma.done [#allocation5], 64
    $region77: #{tpu_custom_call.1} parent=1 // pred_fallthru
      _
    %1089 = vsyncpa [#allocation4], 1
    %1090 = vsyncpa [#allocation7], 1
    %1091 = vsyncpa [#allocation5], 1

</llo_original>
